<compile_context>
chip_gen: v7x
topology: tpu7x:2x2x1
jax: 0.10.0
libtpu: 0.0.40
codegen_flags: <defaults>
</compile_context>

<pallas_src>
import jax
import jax.numpy as jnp
from jax.experimental import pallas as pl
from jax.experimental.pallas import tpu as pltpu

_LANE = 128                 # vreg lane width
_SUBLANE = 8                # vreg sublane depth
_TM_MAX = 32768             # max spatial tile width (lanes)
_TR_MAX = 64                # max rows (batch*class) per tile
_TILE_BYTES = 4 << 20       # per-input per-buffer tile budget (=> <= ~16 MiB pipelined)
_VMEM_LIMIT = 32 * 1024 * 1024
_STATIC_CHUNK_LIMIT = 8     # fully unroll the chunk loop when it is this short


def _round_up(x, m):
    return (x + m - 1) // m * m


def _make_dice_partial_kernel(*, M, tm, tr, s_per, need_mask, n_full, rem, unroll):
    """Per-(split, row-tile) partials of sum(x*t) and sum(x+t), folded to 128 lanes."""

    def kernel(x_ref, t_ref, inter_ref, sum_ref):
        s = pl.program_id(2)  # spatial (reduction) axis — innermost, "arbitrary"

        @pl.when(s == 0)
        def _():
            inter_ref[...] = jnp.zeros_like(inter_ref)
            sum_ref[...] = jnp.zeros_like(sum_ref)

        # Global column of lane 0 of this tile (axis 0 is the megacore spatial split).
        col0 = (pl.program_id(0) * s_per + s) * tm

        if need_mask:
            lane_iota = jax.lax.broadcasted_iota(jnp.int32, (tr, _LANE), 1)

        def chunk(k, carry, dynamic):
            inter_p, sum_p = carry
            if dynamic:
                lo = pl.multiple_of(k * _LANE, _LANE)
                xs = x_ref[:, pl.ds(lo, _LANE)].astype(jnp.float32)
                ts = t_ref[:, pl.ds(lo, _LANE)].astype(jnp.float32)
            else:
                lo = k * _LANE
                xs = x_ref[:, lo:lo + _LANE].astype(jnp.float32)
                ts = t_ref[:, lo:lo + _LANE].astype(jnp.float32)
            if need_mask:
                valid = lane_iota < (M - col0 - lo)
                xs = jnp.where(valid, xs, 0.0)
                ts = jnp.where(valid, ts, 0.0)
            return inter_p + xs * ts, sum_p + (xs + ts)

        acc = (jnp.zeros((tr, _LANE), jnp.float32),
               jnp.zeros((tr, _LANE), jnp.float32))
        if n_full > 0:
            if n_full <= _STATIC_CHUNK_LIMIT:
                for k in range(n_full):
                    acc = chunk(k, acc, dynamic=False)
            else:
                acc = jax.lax.fori_loop(
                    0, n_full, lambda k, c: chunk(k, c, dynamic=True), acc,
                    unroll=unroll)
        inter_p, sum_p = acc

        if rem:  # sub-128 tail of a full-dim spatial tile (only when s_per == 1)
            lo = n_full * _LANE
            xs = x_ref[:, lo:lo + rem].astype(jnp.float32)
            ts = t_ref[:, lo:lo + rem].astype(jnp.float32)
            inter_p = inter_p.at[:, :rem].add(xs * ts)
            sum_p = sum_p.at[:, :rem].add(xs + ts)

        inter_ref[...] += inter_p
        sum_ref[...] += sum_p

    return kernel


def multiclass_dice_loss(inp, target, weights=None):
    """inp, target: (N, C, H, W) (target one-hot).  weights: optional (C,)."""
    N, C, H, W = inp.shape
    assert target.shape == (N, C, H, W)
    M = H * W
    R = N * C

    # Zero-copy flatten of contiguous NCHW -> (N*C, H*W): no transpose, no pad, no upcast.
    x2 = inp.reshape(R, M)
    t2 = target.reshape(R, M)

    itemsize = max(inp.dtype.itemsize, target.dtype.itemsize)

    # --- spatial tiling: balanced multiple-of-128 tiles; single full-dim tile when M fits.
    M128 = _round_up(M, _LANE)
    n_s = pl.cdiv(M128, _TM_MAX)
    if n_s == 1:
        tm = M                                        # full-dim block; tail via `rem`
    else:
        tm = _round_up(pl.cdiv(M128, n_s), _LANE)     # multiple of 128, < M
    s_tiles = pl.cdiv(M, tm)

    # --- row tiling: as many rows as fit the per-buffer VMEM budget.
    tr_cap = min(_TR_MAX,
                 max(_SUBLANE, (_TILE_BYTES // (tm * itemsize)) // _SUBLANE * _SUBLANE))
    if _round_up(R, _SUBLANE) <= tr_cap:
        tr = R                                        # single row tile, full-dim block
    else:
        tr = tr_cap                                   # multiple of 8
    r_tiles = pl.cdiv(R, tr)

    # --- v7x megacore: only one row tile -> split the spatial range across the two cores
    #     (each core owns its own 128-lane output column slab; exact split only).
    n_split = 2 if (r_tiles == 1 and s_tiles >= 2 and s_tiles % 2 == 0) else 1
    s_per = s_tiles // n_split

    need_mask = (s_tiles > 1) and (M % tm != 0)
    n_full, rem = tm // _LANE, tm % _LANE
    unroll = 4 if tr <= 32 else 2

    kernel = _make_dice_partial_kernel(M=M, tm=tm, tr=tr, s_per=s_per,
                                       need_mask=need_mask, n_full=n_full,
                                       rem=rem, unroll=unroll)

    out_rows = r_tiles * tr
    grid = (n_split, r_tiles, s_per)

    inter, xpt = pl.pallas_call(
        kernel,
        out_shape=(
            jax.ShapeDtypeStruct((out_rows, n_split * _LANE), jnp.float32),
            jax.ShapeDtypeStruct((out_rows, n_split * _LANE), jnp.float32),
        ),
        grid_spec=pltpu.PrefetchScalarGridSpec(
            num_scalar_prefetch=0,
            grid=grid,
            in_specs=[
                pl.BlockSpec((tr, tm), lambda c, r, s: (r, c * s_per + s)),
                pl.BlockSpec((tr, tm), lambda c, r, s: (r, c * s_per + s)),
            ],
            out_specs=[
                pl.BlockSpec((tr, _LANE), lambda c, r, s: (r, c)),
                pl.BlockSpec((tr, _LANE), lambda c, r, s: (r, c)),
            ],
        ),
        compiler_params=pltpu.CompilerParams(
            # (split, row) tiles own distinct output blocks -> safe to shard across cores;
            # the spatial axis stays innermost and carries the resident accumulator.
            dimension_semantics=("parallel", "parallel", "arbitrary"),
            vmem_limit_bytes=_VMEM_LIMIT,
        ),
        cost_estimate=pl.CostEstimate(
            flops=3 * R * M,
            transcendentals=0,
            bytes_accessed=R * M * (inp.dtype.itemsize + target.dtype.itemsize)
                           + 2 * out_rows * n_split * _LANE * 4,
        ),
    )(x2, t2)

    # Tiny finish in plain JAX on (R, n_split*128) floats.
    inter_row = jnp.sum(inter[:R], axis=1)            # (R,) = (N*C,)
    xpt_row = jnp.sum(xpt[:R], axis=1)                # (R,)
    inter_c = inter_row.reshape(N, C).sum(axis=0)     # (C,)
    xpt_c = xpt_row.reshape(N, C).sum(axis=0)         # (C,)

    smooth = jnp.float32(1.0)
    dice = 2.0 * (inter_c + smooth) / (xpt_c + smooth)
    if weights is not None:
        dice = dice * jnp.asarray(weights, jnp.float32)
    return jnp.sum(dice)


def _reference(inp, target, weights=None):
    # Pure-JAX reference matching the PyTorch module semantics.
    N, C, H, W = inp.shape
    total = jnp.float32(0.0)
    for i in range(C):
        xf = inp[:, i].reshape(N, -1).astype(jnp.float32)
        tf = target[:, i].reshape(N, -1).astype(jnp.float32)
        inter = jnp.sum(xf * tf)
        loss = 2.0 * (inter + 1.0) / (jnp.sum(xf) + jnp.sum(tf) + 1.0)
        if weights is not None:
            loss = loss * weights[i]
        total = total + loss
    return total


if __name__ == "__main__":
    key = jax.random.PRNGKey(0)
    ks = jax.random.split(key, 8)

    def make_inputs(k1, k2, N, C, H, W):
        # "input" ~ probabilities, "target" ~ one-hot encoded labels
        inp = jax.nn.softmax(jax.random.normal(k1, (N, C, H, W), jnp.float32), axis=1)
        labels = jax.random.randint(k2, (N, H, W), 0, C)
        target = jax.nn.one_hot(labels, C, axis=1, dtype=jnp.float32)
        return inp, target

    # 1) canonical small shape (aligned: R=8, M=256)
    inp, target = make_inputs(ks[0], ks[1], 2, 4, 16, 16)
    loss = jax.block_until_ready(multiclass_dice_loss(inp, target))
    ref = _reference(inp, target)
    assert jnp.allclose(loss, ref, rtol=1e-5, atol=1e-5), (loss, ref)

    w = jnp.array([0.1, 0.2, 0.3, 0.4], jnp.float32)
    loss_w = jax.block_until_ready(multiclass_dice_loss(inp, target, w))
    ref_w = _reference(inp, target, w)
    assert jnp.allclose(loss_w, ref_w, rtol=1e-5, atol=1e-5), (loss_w, ref_w)

    # 2) ragged shape (R=6 rows, M=169 lanes) — exercises the pad-free tail handling
    inp2, target2 = make_inputs(ks[2], ks[3], 2, 3, 13, 13)
    loss2 = jax.block_until_ready(multiclass_dice_loss(inp2, target2))
    ref2 = _reference(inp2, target2)
    assert jnp.allclose(loss2, ref2, rtol=1e-5, atol=1e-5), (loss2, ref2)

    # 3) larger spatial extent (M=1600) — exercises the fori-loop chunk path + remainder
    inp3, target3 = make_inputs(ks[4], ks[5], 2, 4, 40, 40)
    loss3 = jax.block_until_ready(multiclass_dice_loss(inp3, target3))
    ref3 = _reference(inp3, target3)
    assert jnp.allclose(loss3, ref3, rtol=1e-4, atol=1e-4), (loss3, ref3)

    # 4) multi-spatial-tile shape (M=65536) — exercises the 2-way megacore spatial split
    inp4, target4 = make_inputs(ks[6], ks[7], 2, 4, 256, 256)
    loss4 = jax.block_until_ready(multiclass_dice_loss(inp4, target4))
    ref4 = _reference(inp4, target4)
    assert jnp.allclose(loss4, ref4, rtol=1e-4, atol=1e-4), (loss4, ref4)

    print("KERNEL_OK")
</pallas_src>

<mosaic_0001>
module attributes {stable_mosaic.version = 11 : i64} {
  func.func @kernel(%arg0: i32, %arg1: i32, %arg2: i32, %arg3: memref<8x256xf32, #tpu.memory_space<vmem>>, %arg4: memref<8x256xf32, #tpu.memory_space<vmem>>, %arg5: memref<8x128xf32, #tpu.memory_space<vmem>>, %arg6: memref<8x128xf32, #tpu.memory_space<vmem>>) attributes {dimension_semantics = [#tpu.dimension_semantics<parallel>, #tpu.dimension_semantics<parallel>, #tpu.dimension_semantics<arbitrary>], iteration_bounds = array<i64: 1, 1, 1>, scalar_prefetch = 0 : i64, scratch_operands = 0 : i64, tpu.core_type = #tpu.core_type<tc>, window_params = [{transform_indices = @transform_0, window_bounds = array<i64: 8, 256>}, {transform_indices = @transform_1, window_bounds = array<i64: 8, 256>}, {transform_indices = @transform_2, window_bounds = array<i64: 8, 128>}, {transform_indices = @transform_3, window_bounds = array<i64: 8, 128>}]} {
    %c0_i32 = arith.constant 0 : i32
    %0 = arith.cmpi eq, %arg2, %c0_i32 : i32
    %1 = arith.extui %0 : i1 to i32
    %c0_i32_0 = arith.constant 0 : i32
    %2 = arith.cmpi ne, %1, %c0_i32_0 : i32
    scf.if %2 {
      %cst_16 = arith.constant 0.000000e+00 : f32
      %23 = vector.broadcast %cst_16 : f32 to vector<8x128xf32>
      %c0_17 = arith.constant 0 : index
      %c0_18 = arith.constant 0 : index
      %24 = vector.load %arg5[%c0_17, %c0_18] : memref<8x128xf32, #tpu.memory_space<vmem>>, vector<8x128xf32>
      tpu.vector_store %arg5[%c0_17, %c0_18], %23 {strides = array<i32>} : memref<8x128xf32, #tpu.memory_space<vmem>>, vector<8x128xf32>,
      %cst_19 = arith.constant 0.000000e+00 : f32
      %25 = vector.broadcast %cst_19 : f32 to vector<8x128xf32>
      %c0_20 = arith.constant 0 : index
      %c0_21 = arith.constant 0 : index
      %26 = vector.load %arg6[%c0_20, %c0_21] : memref<8x128xf32, #tpu.memory_space<vmem>>, vector<8x128xf32>
      tpu.vector_store %arg6[%c0_20, %c0_21], %25 {strides = array<i32>} : memref<8x128xf32, #tpu.memory_space<vmem>>, vector<8x128xf32>,
    } else {
    }
    %cst = arith.constant 0.000000e+00 : f32
    %3 = vector.broadcast %cst : f32 to vector<8x128xf32>
    %cst_1 = arith.constant 0.000000e+00 : f32
    %4 = vector.broadcast %cst_1 : f32 to vector<8x128xf32>
    %c0 = arith.constant 0 : index
    %c0_2 = arith.constant 0 : index
    %5 = vector.load %arg3[%c0, %c0_2] : memref<8x256xf32, #tpu.memory_space<vmem>>, vector<8x128xf32>
    %c0_3 = arith.constant 0 : index
    %c0_4 = arith.constant 0 : index
    %6 = vector.load %arg4[%c0_3, %c0_4] : memref<8x256xf32, #tpu.memory_space<vmem>>, vector<8x128xf32>
    %7 = arith.mulf %5, %6 : vector<8x128xf32>
    %8 = arith.addf %3, %7 : vector<8x128xf32>
    %9 = arith.addf %5, %6 : vector<8x128xf32>
    %10 = arith.addf %4, %9 : vector<8x128xf32>
    %c0_5 = arith.constant 0 : index
    %c128 = arith.constant 128 : index
    %11 = vector.load %arg3[%c0_5, %c128] : memref<8x256xf32, #tpu.memory_space<vmem>>, vector<8x128xf32>
    %c0_6 = arith.constant 0 : index
    %c128_7 = arith.constant 128 : index
    %12 = vector.load %arg4[%c0_6, %c128_7] : memref<8x256xf32, #tpu.memory_space<vmem>>, vector<8x128xf32>
    %13 = arith.mulf %11, %12 : vector<8x128xf32>
    %14 = arith.addf %8, %13 : vector<8x128xf32>
    %15 = arith.addf %11, %12 : vector<8x128xf32>
    %16 = arith.addf %10, %15 : vector<8x128xf32>
    %c0_8 = arith.constant 0 : index
    %c0_9 = arith.constant 0 : index
    %17 = vector.load %arg5[%c0_8, %c0_9] : memref<8x128xf32, #tpu.memory_space<vmem>>, vector<8x128xf32>
    %18 = arith.addf %17, %14 : vector<8x128xf32>
    %c0_10 = arith.constant 0 : index
    %c0_11 = arith.constant 0 : index
    %19 = vector.load %arg5[%c0_10, %c0_11] : memref<8x128xf32, #tpu.memory_space<vmem>>, vector<8x128xf32>
    tpu.vector_store %arg5[%c0_10, %c0_11], %18 {strides = array<i32>} : memref<8x128xf32, #tpu.memory_space<vmem>>, vector<8x128xf32>,
    %c0_12 = arith.constant 0 : index
    %c0_13 = arith.constant 0 : index
    %20 = vector.load %arg6[%c0_12, %c0_13] : memref<8x128xf32, #tpu.memory_space<vmem>>, vector<8x128xf32>
    %21 = arith.addf %20, %16 : vector<8x128xf32>
    %c0_14 = arith.constant 0 : index
    %c0_15 = arith.constant 0 : index
    %22 = vector.load %arg6[%c0_14, %c0_15] : memref<8x128xf32, #tpu.memory_space<vmem>>, vector<8x128xf32>
    tpu.vector_store %arg6[%c0_14, %c0_15], %21 {strides = array<i32>} : memref<8x128xf32, #tpu.memory_space<vmem>>, vector<8x128xf32>,
    return
  }
  func.func @transform_0(%arg0: i32, %arg1: i32, %arg2: i32) -> (i32, i32) {
    %c1_i32 = arith.constant 1 : i32
    %0 = arith.muli %arg0, %c1_i32 : i32
    %1 = arith.addi %0, %arg2 : i32
    %c0_i32 = arith.constant 0 : i32
    return %arg1, %1 : i32, i32
  }
  func.func @transform_1(%arg0: i32, %arg1: i32, %arg2: i32) -> (i32, i32) {
    %c1_i32 = arith.constant 1 : i32
    %0 = arith.muli %arg0, %c1_i32 : i32
    %1 = arith.addi %0, %arg2 : i32
    %c0_i32 = arith.constant 0 : i32
    return %arg1, %1 : i32, i32
  }
  func.func @transform_2(%arg0: i32, %arg1: i32, %arg2: i32) -> (i32, i32) {
    %c0_i32 = arith.constant 0 : i32
    return %arg1, %arg0 : i32, i32
  }
  func.func @transform_3(%arg0: i32, %arg1: i32, %arg2: i32) -> (i32, i32) {
    %c0_i32 = arith.constant 0 : i32
    return %arg1, %arg0 : i32, i32
  }
}

</mosaic_0001>

<llo_original>
// kernel: tpu_custom_call.1
$region0: #{tpu_custom_call.1}
  #allocation0 [shape = 'u32[]', space=smem, size = 0x4, offset = 0x4, fixed_abs, tag = 'smem constant byte address 0x4 - core index']
  #allocation1 [shape = 'u32[144,128]{1,0:T(1,128)}', space=vmem, size = 0x12000, scoped, tag = 'internal scratch']
  %s0 = inlined_call_operand.hbm [shape: f32[8,256], index: 0, kind: input, shape index: {}]
  %s1 = inlined_call_operand.hbm [shape: f32[8,256], index: 1, kind: input, shape index: {}]
  %s2 = inlined_call_operand.hbm [shape: f32[8,128], index: 2, kind: output, shape index: {0}]
  %s3 = inlined_call_operand.hbm [shape: f32[8,128], index: 3, kind: output, shape index: {1}]
  %4 = xla_tuple %s2, %s3
  %s5 = sld [smem:[#allocation0]]
  $region38: #{tpu_custom_call.1} parent=0
    _
  %s7 = ssub.s32 1, %s5
  %s8 = scalar_select 0, %s7, %s5
  $region1: #{tpu_custom_call.1} parent=0
    #allocation2 [shape = 'u8[8192]{0}', space=vmem, size = 0x2000, scoped, tag = 'input window, operand 0, single buffered']
    #allocation3 [shape = 's32[1]{0}', space=sflag, size = 0x4, scoped, tag = 'scoped memory for tpu_custom_call.1']
    #allocation4 [shape = 's32[1]{0}', space=sflag, size = 0x4, scoped, tag = 'scoped memory for tpu_custom_call.1']
    #allocation5 [shape = 'u8[8192]{0}', space=vmem, size = 0x2000, scoped, tag = 'input window, operand 1, single buffered']
    #allocation6 [shape = 's32[1]{0}', space=sflag, size = 0x4, scoped, tag = 'scoped memory for tpu_custom_call.1']
    #allocation7 [shape = 'u8[4096]{0}', space=vmem, size = 0x1000, scoped, tag = 'output window, operand 0, single buffered']
    #allocation8 [shape = 'u8[4096]{0}', space=vmem, size = 0x1000, scoped, tag = 'output window, operand 1, single buffered']
    #allocation9 [shape = 's32[1]{0}', space=sflag, size = 0x4, scoped, tag = 'scoped memory for tpu_custom_call.1']
    %9 = vsyncpa [#allocation3], 0
    %10 = vsyncpa [#allocation6], 0
    %11 = vsyncpa [#allocation4], 0
    %12 = vsyncpa [#allocation9], 0
    // Predicated region
    $region2: #{tpu_custom_call.1} parent=1 // pred_check
      _
    $region3: #{tpu_custom_call.1} parent=1 // pred_check_branch
      %14 = sbr.rel (0) target = $region5
    $region4: #{tpu_custom_call.1} parent=1 // pred_region
      %s15 = sadd.s32 0, 0
      %s16 = smul.u32 2, %s15
      %s18 = ssub.s32 256, 256
      %19 = vsyncadd [#allocation3], %s18
      %s20 = smul.addr %s16, 128
      %s21 = scalar_lea.hbm %s0, %s20
      %s23 = sshll.u32 [#allocation2], 4
      %s24 = int_to_ptr.vmem [resolvable:$true] %s23
      %26 = dma.hbm_to_vmem [thread:$0]  %s21, 256, %s24, [#allocation3]
    $region5: #{tpu_custom_call.1} parent=1 // pred_fallthru
      _
    // Predicated region
    $region6: #{tpu_custom_call.1} parent=1 // pred_check
      _
    $region7: #{tpu_custom_call.1} parent=1 // pred_check_branch
      %28 = sbr.rel (0) target = $region9
    $region8: #{tpu_custom_call.1} parent=1 // pred_region
      %s29 = sadd.s32 0, 0
      %s30 = smul.u32 2, %s29
      %s32 = ssub.s32 256, 256
      %33 = vsyncadd [#allocation6], %s32
      %s34 = smul.addr %s30, 128
      %s35 = scalar_lea.hbm %s1, %s34
      %s37 = sshll.u32 [#allocation5], 4
      %s38 = int_to_ptr.vmem [resolvable:$true] %s37
      %40 = dma.hbm_to_vmem [thread:$0]  %s35, 256, %s38, [#allocation6]
    $region9: #{tpu_custom_call.1} parent=1 // pred_fallthru
      _
    // Predicated region
    $region10: #{tpu_custom_call.1} parent=1 // pred_check
      _
    $region11: #{tpu_custom_call.1} parent=1 // pred_check_branch
      %42 = sbr.rel (0) target = $region13
    $region12: #{tpu_custom_call.1} parent=1 // pred_region
      %43 = dma.done [#allocation3], 256
    $region13: #{tpu_custom_call.1} parent=1 // pred_fallthru
      _
    // Predicated region
    $region14: #{tpu_custom_call.1} parent=1 // pred_check
      _
    $region15: #{tpu_custom_call.1} parent=1 // pred_check_branch
      %45 = sbr.rel (0) target = $region17
    $region16: #{tpu_custom_call.1} parent=1 // pred_region
      %46 = dma.done [#allocation6], 256
    $region17: #{tpu_custom_call.1} parent=1 // pred_fallthru
      _
    %s47 = sadd.s32 0, 0
    %s48 = smul.u32 2, %s47
    %s49 = sadd.s32 0, 0
    %s50 = smul.u32 2, %s49
    %p51 = scmp.eq.s32.totalorder 0, 0
    // Predicated region
    $region18: #{tpu_custom_call.1} parent=1 // pred_check
      %p52 = pneg %p51
    $region19: #{tpu_custom_call.1} parent=1 // pred_check_branch
      %54 = sbr.rel (%p52) target = $region21
    $region20: #{tpu_custom_call.1} parent=1 // pred_region
      %55 = vst [vmem:[#allocation7] sm:$0xff] 0.0
      %56 = vst [vmem:[#allocation8] sm:$0xff] 0.0
    $region21: #{tpu_custom_call.1} parent=1 // pred_fallthru
      _
    %v57 = vld [vmem:[#allocation2] sm:$0xff]
    %v58 = vld [vmem:[#allocation5] sm:$0xff]
    %v59 = vmul.f32 %v57, %v58
    %v60 = vadd.f32 %v59, 0.0
    %v61 = vadd.f32 %v57, %v58
    %v62 = vadd.f32 %v61, 0.0
    %v63 = vld [vmem:[#allocation2 + $0x8] sm:$0xff]
    %v64 = vld [vmem:[#allocation5 + $0x8] sm:$0xff]
    %v65 = vmul.f32 %v63, %v64
    %v66 = vadd.f32 %v60, %v65
    %v67 = vadd.f32 %v63, %v64
    %v68 = vadd.f32 %v62, %v67
    %v69 = vld [vmem:[#allocation7] sm:$0xff]
    %v70 = vadd.f32 %v69, %v66
    %71 = vst [vmem:[#allocation7] sm:$0xff] %v70
    %v72 = vld [vmem:[#allocation8] sm:$0xff]
    %v73 = vadd.f32 %v72, %v68
    %74 = vst [vmem:[#allocation8] sm:$0xff] %v73
    // Predicated region
    $region22: #{tpu_custom_call.1} parent=1 // pred_check
      _
    $region23: #{tpu_custom_call.1} parent=1 // pred_check_branch
      %76 = sbr.rel (0) target = $region25
    $region24: #{tpu_custom_call.1} parent=1 // pred_region
      %s78 = ssub.s32 128, 128
      %79 = vsyncadd [#allocation4], %s78
      %s81 = sshll.u32 [#allocation7], 4
      %s82 = int_to_ptr.vmem [resolvable:$true] %s81
      %84 = dma.vmem_to_hbm [thread:$0]  %s82, 128, %s2, [#allocation4]
    $region25: #{tpu_custom_call.1} parent=1 // pred_fallthru
      _
    // Predicated region
    $region26: #{tpu_custom_call.1} parent=1 // pred_check
      _
    $region27: #{tpu_custom_call.1} parent=1 // pred_check_branch
      %86 = sbr.rel (0) target = $region29
    $region28: #{tpu_custom_call.1} parent=1 // pred_region
      %s88 = ssub.s32 128, 128
      %89 = vsyncadd [#allocation9], %s88
      %s91 = sshll.u32 [#allocation8], 4
      %s92 = int_to_ptr.vmem [resolvable:$true] %s91
      %94 = dma.vmem_to_hbm [thread:$0]  %s92, 128, %s3, [#allocation9]
    $region29: #{tpu_custom_call.1} parent=1 // pred_fallthru
      _
    // Predicated region
    $region30: #{tpu_custom_call.1} parent=1 // pred_check
      _
    $region31: #{tpu_custom_call.1} parent=1 // pred_check_branch
      %96 = sbr.rel (0) target = $region33
    $region32: #{tpu_custom_call.1} parent=1 // pred_region
      %97 = dma.done [#allocation4], 128
    $region33: #{tpu_custom_call.1} parent=1 // pred_fallthru
      _
    // Predicated region
    $region34: #{tpu_custom_call.1} parent=1 // pred_check
      _
    $region35: #{tpu_custom_call.1} parent=1 // pred_check_branch
      %99 = sbr.rel (0) target = $region37
    $region36: #{tpu_custom_call.1} parent=1 // pred_region
      %100 = dma.done [#allocation9], 128
    $region37: #{tpu_custom_call.1} parent=1 // pred_fallthru
      _
    %101 = vsyncpa [#allocation3], 1
    %102 = vsyncpa [#allocation6], 1
    %103 = vsyncpa [#allocation4], 1
    %104 = vsyncpa [#allocation9], 1

</llo_original>
